<compile_context>
chip_gen: v7x
topology: tpu7x:2x2x1
jax: 0.10.0
libtpu: 0.0.40
codegen_flags: <defaults>
</compile_context>

<pallas_src>
import functools

import jax
import jax.numpy as jnp
from jax.experimental import pallas as pl
from jax.experimental.pallas import tpu as pltpu


def _round_up(n, m):
    return ((n + m - 1) // m) * m


def _cdiv(a, b):
    return (a + b - 1) // b


def vae_kernel(xin_ref, w1_ref, wh_ref, w2_ref, w3_ref, b_ref, out_ref, *,
               input_dim, latent_dim):
    """One batch tile: encode -> reparameterize -> decode, all resident in VMEM."""
    D, L = input_dim, latent_dim
    Hp = w1_ref.shape[1]       # padded hidden dim
    Wout = w3_ref.shape[1]     # padded packed-output width (>= D + 2L)

    biases = b_ref[...]
    b1 = biases[0:1, :Hp]
    bh = biases[1:2, :Wout]
    b2 = biases[2:3, :Hp]
    b3 = biases[3:4, :Wout]

    xin = xin_ref[...]         # (tb, Win): lanes [0:D]=x, [D:D+L]=eps, rest zero

    # ---- encode: fc1 + ReLU.  w1 rows under the eps lanes are zero, so the
    # packed [x | eps] operand can be contracted directly. ----
    h1 = jnp.dot(xin, w1_ref[...], preferred_element_type=jnp.float32) + b1
    h1 = jnp.maximum(h1, 0.0)

    # Fused [fc_mu | fc_logvar] head: lanes [0:L]=mu, [L:2L]=logvar, rest zero.
    head = jnp.dot(h1, wh_ref[...], preferred_element_type=jnp.float32) + bh

    # ---- reparameterize: z = mu + eps * exp(0.5 * logvar) ----
    mu = head[:, :L]
    logvar = head[:, L:2 * L]
    eps = xin[:, D:D + L]
    z = mu + eps * jnp.exp(0.5 * logvar)                     # (tb, L), EUP exp

    # ---- decode ----
    # fc2 has contraction length K = latent_dim: while L is tiny do it on the VPU
    # as broadcast multiply-adds; for larger L use one MXU dot with z zero-padded
    # to the sublane-padded K held in w2_ref.
    if L <= 4:
        h2 = b2
        for k in range(L):
            h2 = h2 + z[:, k:k + 1] * w2_ref[k:k + 1, :]
    else:
        Lr = w2_ref.shape[0]
        zp = jnp.pad(z, ((0, 0), (0, Lr - L)))
        h2 = jnp.dot(zp, w2_ref[...], preferred_element_type=jnp.float32) + b2
    h2 = jnp.maximum(h2, 0.0)

    recon = jax.nn.sigmoid(
        jnp.dot(h2, w3_ref[...], preferred_element_type=jnp.float32) + b3)

    # ---- single lane-dense packed store: lanes [0:D]=recon, [D:D+2L]=mu|logvar.
    # roll shifts the head so mu|logvar land at lanes D..D+2L-1; the select keeps
    # the store a full unmasked vreg write (no vst.msk). ----
    col = jax.lax.broadcasted_iota(jnp.int32, (xin.shape[0], Wout), 1)
    head_shift = pltpu.roll(head, shift=D, axis=1)
    out_ref[...] = jnp.where(col < D, recon, head_shift)


def init_params(key, input_dim, hidden_dim=64, latent_dim=2):
    """torch.nn.Linear-style init; weights stored as (in, out) = W^T of torch."""
    ks = jax.random.split(key, 10)

    def linear(kw, kb, fan_in, fan_out):
        bound = 1.0 / jnp.sqrt(fan_in)
        w = jax.random.uniform(kw, (fan_in, fan_out), jnp.float32, -bound, bound)
        b = jax.random.uniform(kb, (1, fan_out), jnp.float32, -bound, bound)
        return w, b

    w1, b1 = linear(ks[0], ks[1], input_dim, hidden_dim)
    w_mu, b_mu = linear(ks[2], ks[3], hidden_dim, latent_dim)
    w_lv, b_lv = linear(ks[4], ks[5], hidden_dim, latent_dim)
    w2, b2 = linear(ks[6], ks[7], latent_dim, hidden_dim)
    w3, b3 = linear(ks[8], ks[9], hidden_dim, input_dim)
    return {"w1": w1, "b1": b1, "w_mu": w_mu, "b_mu": b_mu,
            "w_logvar": w_lv, "b_logvar": b_lv,
            "w2": w2, "b2": b2, "w3": w3, "b3": b3}


def pack_params(params):
    """One-time prep: fuse the mu/logvar head, pad lane-dense, pack the biases.

    Layout (all f32, lane-dense last dims):
      w1     : (Win, Hp)   rows [0:D] = fc1 weight, rows under eps lanes are zero
      w_head : (Hp, Wout)  cols [0:2L] = [w_mu | w_logvar]
      w2     : (Lr, Hp)    rows [0:L] = fc2 weight (Lr = sublane-padded K)
      w3     : (Hp, Wout)  cols [0:D] = fc3 weight
      biases : (8, Wmax)   row0=b1, row1=[b_mu|b_logvar], row2=b2, row3=b3
    """
    w1, b1 = params["w1"], params["b1"]
    wmu, bmu = params["w_mu"], params["b_mu"]
    wlv, blv = params["w_logvar"], params["b_logvar"]
    w2, b2 = params["w2"], params["b2"]
    w3, b3 = params["w3"], params["b3"]

    D, H = w1.shape
    L = wmu.shape[1]
    Win = _round_up(D + L, 128)        # packed input width: [x | eps]
    Hp = _round_up(H, 128)
    Wout = _round_up(D + 2 * L, 128)   # packed output width: [recon | mu | logvar]
    Lr = _round_up(max(L, 8), 8)

    def pad2(a, rows, cols):
        return jnp.pad(a, ((0, rows - a.shape[0]), (0, cols - a.shape[1])))

    packed = {
        "w1": pad2(w1, Win, Hp),
        "w_head": pad2(jnp.concatenate([wmu, wlv], axis=1), Hp, Wout),
        "w2": pad2(w2, Lr, Hp),
        "w3": pad2(w3, Hp, Wout),
    }
    wmax = max(Hp, Wout)
    biases = jnp.zeros((8, wmax), jnp.float32)
    biases = biases.at[0, :H].set(b1[0])
    biases = biases.at[1, :2 * L].set(jnp.concatenate([bmu[0], blv[0]]))
    biases = biases.at[2, :H].set(b2[0])
    biases = biases.at[3, :D].set(b3[0])
    packed["biases"] = biases
    return packed


@functools.partial(jax.jit, static_argnames=("input_dim", "latent_dim", "batch_tile"))
def vae_forward(x, eps, packed, *, input_dim, latent_dim, batch_tile=None):
    B = x.shape[0]
    D, L = input_dim, latent_dim
    Win, Hp = packed["w1"].shape
    Wout = packed["w3"].shape[1]
    Lr = packed["w2"].shape[0]
    wmax = packed["biases"].shape[1]

    # ---- batch tile: cdiv-aware so the tail tile isn't mostly padding ----
    weight_bytes = 4 * (Win * Hp + Hp * Wout + Lr * Hp + Hp * Wout + 8 * wmax)
    row_bytes = 2 * 4 * (Win + Wout)       # double-buffered input + output, per row
    tile_budget = 24 * 1024 * 1024         # conservative; fits every generation
    tb_max = batch_tile if batch_tile is not None else 2048
    n = max(1, _cdiv(B, tb_max))
    tb = max(8, _round_up(_cdiv(B, n), 8))
    while tb > 8 and weight_bytes + tb * row_bytes > tile_budget:
        tb = _round_up(tb // 2, 8)
    # v7x has two TensorCores: if the grid would be a single step and the batch
    # allows it, split once so the "parallel" axis actually uses both cores
    # (free on v5e/v6e, which have one TC).
    if _cdiv(B, tb) == 1 and tb >= 16:
        tb = _round_up(_cdiv(tb, 2), 8)
    grid_n = _cdiv(B, tb)
    Bp = grid_n * tb

    # Explicit, buffer-sized VMEM limit: no reliance on the 16/32/32 MiB scoped
    # defaults (v5e/v6e/v7x); stays well under v7x's 64 MiB physical VMEM.
    vmem_limit = int(min(48 << 20,
                         max(16 << 20, weight_bytes + tb * row_bytes + (4 << 20))))

    # ---- single packed input [x | eps], one concat + one pad (fused in-jit) ----
    xin = jnp.concatenate([x, eps], axis=1)                       # (B, D+L)
    xin = jnp.pad(xin, ((0, Bp - B), (0, Win - (D + L))))         # (Bp, Win)

    row = lambda shape: pl.BlockSpec(shape, lambda i: (i, 0))     # tiled over batch
    resident = lambda shape: pl.BlockSpec(                        # stays in VMEM,
        shape, lambda i: (0, 0), pipeline_mode=pl.Buffered(1))    # single-buffered

    out = pl.pallas_call(
        functools.partial(vae_kernel, input_dim=D, latent_dim=L),
        out_shape=jax.ShapeDtypeStruct((Bp, Wout), jnp.float32),
        grid=(grid_n,),
        in_specs=[
            row((tb, Win)),           # packed [x | eps]
            resident((Win, Hp)),      # w1
            resident((Hp, Wout)),     # fused mu|logvar head weight
            resident((Lr, Hp)),       # w2
            resident((Hp, Wout)),     # w3
            resident((8, wmax)),      # packed biases
        ],
        out_specs=row((tb, Wout)),    # packed [recon | mu | logvar]
        compiler_params=pltpu.CompilerParams(
            dimension_semantics=("parallel",),
            vmem_limit_bytes=vmem_limit),
    )(xin, packed["w1"], packed["w_head"], packed["w2"], packed["w3"],
      packed["biases"])

    recon = out[:B, :D]
    mu = out[:B, D:D + L]
    logvar = out[:B, D + L:D + 2 * L]
    return recon, mu, logvar


def vae_forward_ref(x, eps, p):
    """Pure-JAX reference mirroring the PyTorch forward (f32-accurate matmuls)."""
    hi = jax.lax.Precision.HIGHEST
    h1 = jnp.maximum(jnp.dot(x, p["w1"], precision=hi) + p["b1"], 0.0)
    mu = jnp.dot(h1, p["w_mu"], precision=hi) + p["b_mu"]
    logvar = jnp.dot(h1, p["w_logvar"], precision=hi) + p["b_logvar"]
    std = jnp.exp(0.5 * logvar)
    z = mu + eps * std
    h2 = jnp.maximum(jnp.dot(z, p["w2"], precision=hi) + p["b2"], 0.0)
    recon = jax.nn.sigmoid(jnp.dot(h2, p["w3"], precision=hi) + p["b3"])
    return recon, mu, logvar


if __name__ == "__main__":
    key = jax.random.PRNGKey(0)
    k_param, k_x, k_eps = jax.random.split(key, 3)

    batch, input_dim, hidden_dim, latent_dim = 8, 16, 32, 2
    params = init_params(k_param, input_dim, hidden_dim, latent_dim)
    packed = pack_params(params)

    x = jax.random.normal(k_x, (batch, input_dim), jnp.float32)
    # eps plays the role of torch.randn_like(std) in reparameterize()
    eps = jax.random.normal(k_eps, (batch, latent_dim), jnp.float32)

    recon, mu, logvar = vae_forward(
        x, eps, packed, input_dim=input_dim, latent_dim=latent_dim)
    jax.block_until_ready((recon, mu, logvar))

    r_ref, mu_ref, lv_ref = vae_forward_ref(x, eps, params)
    assert recon.shape == (batch, input_dim)
    assert mu.shape == (batch, latent_dim)
    assert logvar.shape == (batch, latent_dim)
    assert jnp.allclose(mu, mu_ref, atol=1e-5), float(jnp.max(jnp.abs(mu - mu_ref)))
    assert jnp.allclose(logvar, lv_ref, atol=1e-5), float(jnp.max(jnp.abs(logvar - lv_ref)))
    assert jnp.allclose(recon, r_ref, atol=1e-5), float(jnp.max(jnp.abs(recon - r_ref)))

    print("KERNEL_OK")
</pallas_src>

<mosaic_0001>
module attributes {stable_mosaic.version = 11 : i64} {
  func.func @vae_kernel(%arg0: i32, %arg1: memref<8x128xf32, #tpu.memory_space<vmem>>, %arg2: memref<128x128xf32, #tpu.memory_space<vmem>>, %arg3: memref<128x128xf32, #tpu.memory_space<vmem>>, %arg4: memref<8x128xf32, #tpu.memory_space<vmem>>, %arg5: memref<128x128xf32, #tpu.memory_space<vmem>>, %arg6: memref<8x128xf32, #tpu.memory_space<vmem>>, %arg7: memref<8x128xf32, #tpu.memory_space<vmem>>) attributes {dimension_semantics = [#tpu.dimension_semantics<parallel>], iteration_bounds = array<i64: 1>, scalar_prefetch = 0 : i64, scratch_operands = 0 : i64, tpu.core_type = #tpu.core_type<tc>, window_params = [{transform_indices = @transform_0, window_bounds = array<i64: 8, 128>}, {pipeline_mode = #tpu.pipeline_mode<synchronous>, transform_indices = @transform_1, window_bounds = array<i64: 128, 128>}, {pipeline_mode = #tpu.pipeline_mode<synchronous>, transform_indices = @transform_2, window_bounds = array<i64: 128, 128>}, {pipeline_mode = #tpu.pipeline_mode<synchronous>, transform_indices = @transform_3, window_bounds = array<i64: 8, 128>}, {pipeline_mode = #tpu.pipeline_mode<synchronous>, transform_indices = @transform_4, window_bounds = array<i64: 128, 128>}, {pipeline_mode = #tpu.pipeline_mode<synchronous>, transform_indices = @transform_5, window_bounds = array<i64: 8, 128>}, {transform_indices = @transform_6, window_bounds = array<i64: 8, 128>}]} {
    %c0 = arith.constant 0 : index
    %c0_0 = arith.constant 0 : index
    %0 = vector.load %arg6[%c0, %c0_0] : memref<8x128xf32, #tpu.memory_space<vmem>>, vector<8x128xf32>
    %1 = vector.extract_strided_slice %0 {offsets = [0, 0], sizes = [1, 128], strides = [1, 1]} : vector<8x128xf32> to vector<1x128xf32>
    %2 = vector.extract_strided_slice %0 {offsets = [1, 0], sizes = [1, 128], strides = [1, 1]} : vector<8x128xf32> to vector<1x128xf32>
    %3 = vector.extract_strided_slice %0 {offsets = [2, 0], sizes = [1, 128], strides = [1, 1]} : vector<8x128xf32> to vector<1x128xf32>
    %4 = vector.extract_strided_slice %0 {offsets = [3, 0], sizes = [1, 128], strides = [1, 1]} : vector<8x128xf32> to vector<1x128xf32>
    %c0_1 = arith.constant 0 : index
    %c0_2 = arith.constant 0 : index
    %5 = vector.load %arg1[%c0_1, %c0_2] : memref<8x128xf32, #tpu.memory_space<vmem>>, vector<8x128xf32>
    %c0_3 = arith.constant 0 : index
    %c0_4 = arith.constant 0 : index
    %6 = vector.load %arg2[%c0_3, %c0_4] : memref<128x128xf32, #tpu.memory_space<vmem>>, vector<128x128xf32>
    %cst = arith.constant dense<0.000000e+00> : vector<8x128xf32>
    %7 = tpu.matmul %5, %6, %cst {dimension_numbers = #tpu.dot_dimension_numbers<[1], [0], [0], [1], [0, 0, 1, 1], [], []>} : vector<8x128xf32>, vector<128x128xf32>, vector<8x128xf32> -> vector<8x128xf32>
    %8 = vector.broadcast %1 : vector<1x128xf32> to vector<8x128xf32>
    %9 = arith.addf %7, %8 : vector<8x128xf32>
    %cst_5 = arith.constant 0.000000e+00 : f32
    %10 = vector.broadcast %cst_5 : f32 to vector<8x128xf32>
    %11 = arith.maximumf %9, %10 : vector<8x128xf32>
    %c0_6 = arith.constant 0 : index
    %c0_7 = arith.constant 0 : index
    %12 = vector.load %arg3[%c0_6, %c0_7] : memref<128x128xf32, #tpu.memory_space<vmem>>, vector<128x128xf32>
    %cst_8 = arith.constant dense<0.000000e+00> : vector<8x128xf32>
    %13 = tpu.matmul %11, %12, %cst_8 {dimension_numbers = #tpu.dot_dimension_numbers<[1], [0], [0], [1], [0, 0, 1, 1], [], []>} : vector<8x128xf32>, vector<128x128xf32>, vector<8x128xf32> -> vector<8x128xf32>
    %14 = vector.broadcast %2 : vector<1x128xf32> to vector<8x128xf32>
    %15 = arith.addf %13, %14 : vector<8x128xf32>
    %16 = vector.extract_strided_slice %15 {offsets = [0, 0], sizes = [8, 2], strides = [1, 1]} : vector<8x128xf32> to vector<8x2xf32>
    %17 = vector.extract_strided_slice %15 {offsets = [0, 2], sizes = [8, 2], strides = [1, 1]} : vector<8x128xf32> to vector<8x2xf32>
    %18 = vector.extract_strided_slice %5 {offsets = [0, 16], sizes = [8, 2], strides = [1, 1]} : vector<8x128xf32> to vector<8x2xf32>
    %cst_9 = arith.constant 5.000000e-01 : f32
    %19 = vector.broadcast %cst_9 : f32 to vector<8x2xf32>
    %20 = arith.mulf %19, %17 : vector<8x2xf32>
    %21 = math.exp %20 : vector<8x2xf32>
    %22 = arith.mulf %18, %21 : vector<8x2xf32>
    %23 = arith.addf %16, %22 : vector<8x2xf32>
    %24 = vector.extract_strided_slice %23 {offsets = [0, 0], sizes = [8, 1], strides = [1, 1]} : vector<8x2xf32> to vector<8x1xf32>
    %c0_10 = arith.constant 0 : index
    %c0_11 = arith.constant 0 : index
    %25 = vector.load %arg4[%c0_10, %c0_11] : memref<8x128xf32, #tpu.memory_space<vmem>>, vector<1x128xf32>
    %26 = vector.broadcast %24 : vector<8x1xf32> to vector<8x128xf32>
    %27 = vector.broadcast %25 : vector<1x128xf32> to vector<8x128xf32>
    %28 = arith.mulf %26, %27 : vector<8x128xf32>
    %29 = vector.broadcast %3 : vector<1x128xf32> to vector<8x128xf32>
    %30 = arith.addf %29, %28 : vector<8x128xf32>
    %31 = vector.extract_strided_slice %23 {offsets = [0, 1], sizes = [8, 1], strides = [1, 1]} : vector<8x2xf32> to vector<8x1xf32>
    %c1 = arith.constant 1 : index
    %c0_12 = arith.constant 0 : index
    %32 = vector.load %arg4[%c1, %c0_12] : memref<8x128xf32, #tpu.memory_space<vmem>>, vector<1x128xf32>
    %33 = vector.broadcast %31 : vector<8x1xf32> to vector<8x128xf32>
    %34 = vector.broadcast %32 : vector<1x128xf32> to vector<8x128xf32>
    %35 = arith.mulf %33, %34 : vector<8x128xf32>
    %36 = arith.addf %30, %35 : vector<8x128xf32>
    %cst_13 = arith.constant 0.000000e+00 : f32
    %37 = vector.broadcast %cst_13 : f32 to vector<8x128xf32>
    %38 = arith.maximumf %36, %37 : vector<8x128xf32>
    %c0_14 = arith.constant 0 : index
    %c0_15 = arith.constant 0 : index
    %39 = vector.load %arg5[%c0_14, %c0_15] : memref<128x128xf32, #tpu.memory_space<vmem>>, vector<128x128xf32>
    %cst_16 = arith.constant dense<0.000000e+00> : vector<8x128xf32>
    %40 = tpu.matmul %38, %39, %cst_16 {dimension_numbers = #tpu.dot_dimension_numbers<[1], [0], [0], [1], [0, 0, 1, 1], [], []>} : vector<8x128xf32>, vector<128x128xf32>, vector<8x128xf32> -> vector<8x128xf32>
    %41 = vector.broadcast %4 : vector<1x128xf32> to vector<8x128xf32>
    %42 = arith.addf %40, %41 : vector<8x128xf32>
    %43 = arith.negf %42 : vector<8x128xf32>
    %44 = math.exp %43 : vector<8x128xf32>
    %cst_17 = arith.constant 1.000000e+00 : f32
    %45 = vector.broadcast %cst_17 : f32 to vector<8x128xf32>
    %46 = arith.addf %45, %44 : vector<8x128xf32>
    %47 = arith.divf %45, %46 : vector<8x128xf32>
    %48 = tpu.iota {dimensions = array<i32: 1>} : vector<8x128xi32>
    %c16_i32 = arith.constant 16 : i32
    %49 = tpu.dynamic_rotate %15 by %c16_i32 dim 1 : vector<8x128xf32>, i32 -> vector<8x128xf32>
    %c16_i32_18 = arith.constant 16 : i32
    %50 = vector.broadcast %c16_i32_18 : i32 to vector<8x128xi32>
    %51 = arith.cmpi slt, %48, %50 : vector<8x128xi32>
    %52 = arith.select %51, %47, %49 : vector<8x128xi1>, vector<8x128xf32>
    %c0_19 = arith.constant 0 : index
    %c0_20 = arith.constant 0 : index
    %53 = vector.load %arg7[%c0_19, %c0_20] : memref<8x128xf32, #tpu.memory_space<vmem>>, vector<8x128xf32>
    tpu.vector_store %arg7[%c0_19, %c0_20], %52 {strides = array<i32>} : memref<8x128xf32, #tpu.memory_space<vmem>>, vector<8x128xf32>,
    return
  }
  func.func @transform_0(%arg0: i32) -> (i32, i32) {
    %c0_i32 = arith.constant 0 : i32
    %c0_i32_0 = arith.constant 0 : i32
    return %arg0, %c0_i32 : i32, i32
  }
  func.func @transform_1(%arg0: i32) -> (i32, i32) {
    %c0_i32 = arith.constant 0 : i32
    %c0_i32_0 = arith.constant 0 : i32
    %c0_i32_1 = arith.constant 0 : i32
    return %c0_i32, %c0_i32_0 : i32, i32
  }
  func.func @transform_2(%arg0: i32) -> (i32, i32) {
    %c0_i32 = arith.constant 0 : i32
    %c0_i32_0 = arith.constant 0 : i32
    %c0_i32_1 = arith.constant 0 : i32
    return %c0_i32, %c0_i32_0 : i32, i32
  }
  func.func @transform_3(%arg0: i32) -> (i32, i32) {
    %c0_i32 = arith.constant 0 : i32
    %c0_i32_0 = arith.constant 0 : i32
    %c0_i32_1 = arith.constant 0 : i32
    return %c0_i32, %c0_i32_0 : i32, i32
  }
  func.func @transform_4(%arg0: i32) -> (i32, i32) {
    %c0_i32 = arith.constant 0 : i32
    %c0_i32_0 = arith.constant 0 : i32
    %c0_i32_1 = arith.constant 0 : i32
    return %c0_i32, %c0_i32_0 : i32, i32
  }
  func.func @transform_5(%arg0: i32) -> (i32, i32) {
    %c0_i32 = arith.constant 0 : i32
    %c0_i32_0 = arith.constant 0 : i32
    %c0_i32_1 = arith.constant 0 : i32
    return %c0_i32, %c0_i32_0 : i32, i32
  }
  func.func @transform_6(%arg0: i32) -> (i32, i32) {
    %c0_i32 = arith.constant 0 : i32
    %c0_i32_0 = arith.constant 0 : i32
    return %arg0, %c0_i32 : i32, i32
  }
}

</mosaic_0001>

<llo_original>
// kernel: vae_forward.1
$region0: #{vae_forward.1}
  #allocation0 [shape = 'u32[]', space=smem, size = 0x4, offset = 0x4, fixed_abs, tag = 'smem constant byte address 0x4 - core index']
  #allocation1 [shape = 'u32[144,128]{1,0:T(1,128)}', space=vmem, size = 0x12000, scoped, tag = 'internal scratch']
  %s0 = inlined_call_operand.vmem [shape: f32[8,128], index: 0, kind: input, shape index: {}]
  %s1 = inlined_call_operand.hbm [shape: f32[128,128], index: 1, kind: input, shape index: {}]
  %s2 = inlined_call_operand.hbm [shape: f32[128,128], index: 2, kind: input, shape index: {}]
  %s3 = inlined_call_operand.vmem [shape: f32[8,128], index: 3, kind: input, shape index: {}]
  %s4 = inlined_call_operand.hbm [shape: f32[128,128], index: 4, kind: input, shape index: {}]
  %s5 = inlined_call_operand.vmem [shape: f32[8,128], index: 5, kind: input, shape index: {}]
  %s6 = inlined_call_operand.vmem [shape: f32[8,128], index: 6, kind: output, shape index: {}]
  %s7 = sld [smem:[#allocation0]]
  $region46: #{vae_forward.1} parent=0
    _
  %s9 = ssub.s32 1, %s7
  %s10 = scalar_select 0, %s9, %s7
  $region1: #{vae_forward.1} parent=0
    #allocation2 [shape = 'u8[65536]{0}', space=vmem, size = 0x10000, scoped, tag = 'input window, operand 1, single buffered']
    #allocation3 [shape = 's32[1]{0}', space=sflag, size = 0x4, scoped, tag = 'scoped memory for vae_forward.1']
    #allocation4 [shape = 'u8[65536]{0}', space=vmem, size = 0x10000, scoped, tag = 'input window, operand 2, single buffered']
    #allocation5 [shape = 's32[1]{0}', space=sflag, size = 0x4, scoped, tag = 'scoped memory for vae_forward.1']
    #allocation6 [shape = 'u8[65536]{0}', space=vmem, size = 0x10000, scoped, tag = 'input window, operand 4, single buffered']
    %11 = vsyncpa [#allocation3], 0
    %12 = vsyncpa [#allocation5], 0
    // Predicated region
    $region2: #{vae_forward.1} parent=1 // pred_check
      _
    $region3: #{vae_forward.1} parent=1 // pred_check_branch
      %14 = sbr.rel (0) target = $region5
    $region4: #{vae_forward.1} parent=1 // pred_region
      _
    $region5: #{vae_forward.1} parent=1 // pred_fallthru
      _
    // Predicated region
    $region6: #{vae_forward.1} parent=1 // pred_check
      _
    $region7: #{vae_forward.1} parent=1 // pred_check_branch
      %16 = sbr.rel (0) target = $region9
    $region8: #{vae_forward.1} parent=1 // pred_region
      %s18 = ssub.s32 2048, 2048
      %19 = vsyncadd [#allocation3], %s18
      %s20 = sshll.u32 [#allocation2], 4
      %s21 = int_to_ptr.vmem [resolvable:$true] %s20
      %26 = dma.hbm_to_vmem [thread:$0]  %s1, 2048, %s21, [#allocation3], 128, 128, 8
    $region9: #{vae_forward.1} parent=1 // pred_fallthru
      _
    // Predicated region
    $region10: #{vae_forward.1} parent=1 // pred_check
      _
    $region11: #{vae_forward.1} parent=1 // pred_check_branch
      %28 = sbr.rel (0) target = $region13
    $region12: #{vae_forward.1} parent=1 // pred_region
      %s30 = ssub.s32 2048, 2048
      %31 = vsyncadd [#allocation5], %s30
      %s32 = sshll.u32 [#allocation4], 4
      %s33 = int_to_ptr.vmem [resolvable:$true] %s32
      %38 = dma.hbm_to_vmem [thread:$0]  %s2, 2048, %s33, [#allocation5], 128, 128, 8
    $region13: #{vae_forward.1} parent=1 // pred_fallthru
      _
    // Predicated region
    $region14: #{vae_forward.1} parent=1 // pred_check
      _
    $region15: #{vae_forward.1} parent=1 // pred_check_branch
      %40 = sbr.rel (0) target = $region17
    $region16: #{vae_forward.1} parent=1 // pred_region
      _
    $region17: #{vae_forward.1} parent=1 // pred_fallthru
      _
    // Predicated region
    $region18: #{vae_forward.1} parent=1 // pred_check
      _
    $region19: #{vae_forward.1} parent=1 // pred_check_branch
      %42 = sbr.rel (0) target = $region21
    $region20: #{vae_forward.1} parent=1 // pred_region
      %s44 = ssub.s32 2048, 2048
      %45 = vsyncadd [#allocation5], %s44
      %s46 = sshll.u32 [#allocation6], 4
      %s47 = int_to_ptr.vmem [resolvable:$true] %s46
      %52 = dma.hbm_to_vmem [thread:$0]  %s4, 2048, %s47, [#allocation5], 128, 128, 8
    $region21: #{vae_forward.1} parent=1 // pred_fallthru
      _
    // Predicated region
    $region22: #{vae_forward.1} parent=1 // pred_check
      _
    $region23: #{vae_forward.1} parent=1 // pred_check_branch
      %54 = sbr.rel (0) target = $region25
    $region24: #{vae_forward.1} parent=1 // pred_region
      _
    $region25: #{vae_forward.1} parent=1 // pred_fallthru
      _
    // Predicated region
    $region26: #{vae_forward.1} parent=1 // pred_check
      _
    $region27: #{vae_forward.1} parent=1 // pred_check_branch
      %56 = sbr.rel (0) target = $region29
    $region28: #{vae_forward.1} parent=1 // pred_region
      %57 = dma.done [#allocation3], 2048
    $region29: #{vae_forward.1} parent=1 // pred_fallthru
      _
    // Predicated region
    $region30: #{vae_forward.1} parent=1 // pred_check
      _
    $region31: #{vae_forward.1} parent=1 // pred_check_branch
      %59 = sbr.rel (0) target = $region33
    $region32: #{vae_forward.1} parent=1 // pred_region
      %60 = dma.done [#allocation5], 2048
    $region33: #{vae_forward.1} parent=1 // pred_fallthru
      _
    // Predicated region
    $region34: #{vae_forward.1} parent=1 // pred_check
      _
    $region35: #{vae_forward.1} parent=1 // pred_check_branch
      %62 = sbr.rel (0) target = $region37
    $region36: #{vae_forward.1} parent=1 // pred_region
      %63 = dma.done [#allocation5], 2048
    $region37: #{vae_forward.1} parent=1 // pred_fallthru
      _
    %v64 = vld [vmem:[%s5] sm:$0xff]
    %v65 = vld [vmem:[%s0] sm:$0xff]
    %v66 = vld [vmem:[#allocation2] sm:$0xff]
    %v67 = vld [vmem:[#allocation2 + $0x8] sm:$0xff]
    %v68 = vld [vmem:[#allocation2 + $0x10] sm:$0xff]
    %v69 = vld [vmem:[#allocation2 + $0x18] sm:$0xff]
    %v70 = vld [vmem:[#allocation2 + $0x20] sm:$0xff]
    %v71 = vld [vmem:[#allocation2 + $0x28] sm:$0xff]
    %v72 = vld [vmem:[#allocation2 + $0x30] sm:$0xff]
    %v73 = vld [vmem:[#allocation2 + $0x38] sm:$0xff]
    %v74 = vld [vmem:[#allocation2 + $0x40] sm:$0xff]
    %v75 = vld [vmem:[#allocation2 + $0x48] sm:$0xff]
    %v76 = vld [vmem:[#allocation2 + $0x50] sm:$0xff]
    %v77 = vld [vmem:[#allocation2 + $0x58] sm:$0xff]
    %v78 = vld [vmem:[#allocation2 + $0x60] sm:$0xff]
    %v79 = vld [vmem:[#allocation2 + $0x68] sm:$0xff]
    %v80 = vld [vmem:[#allocation2 + $0x70] sm:$0xff]
    %v81 = vld [vmem:[#allocation2 + $0x78] sm:$0xff]
    %v82 = vlaneseq
    %v83 = vshrl.u32 %v82, 7
    %v84 = vsub.s32 0, %v83
    %v85 = vrot.slane %v64, %v84
    %86 = vmatprep.subr.mxu0 0.0
    %87 = vmatpush1.msra.mxu0 %v66
    %88 = vmatprep.subr.mxu0 0.0
    %89 = vmatpush1.msra.mxu0 %v67
    %90 = vmatprep.subr.mxu0 0.0
    %91 = vmatpush1.msra.mxu0 %v68
    %92 = vmatprep.subr.mxu0 0.0
    %93 = vmatpush1.msra.mxu0 %v69
    %94 = vmatprep.subr.mxu0 0.0
    %95 = vmatpush1.msra.mxu0 %v70
    %96 = vmatprep.subr.mxu0 0.0
    %97 = vmatpush1.msra.mxu0 %v71
    %98 = vmatprep.subr.mxu0 0.0
    %99 = vmatpush1.msra.mxu0 %v72
    %100 = vmatprep.subr.mxu0 0.0
    %101 = vmatpush1.msra.mxu0 %v73
    %102 = vmatprep.subr.mxu0 0.0
    %103 = vmatpush1.msra.mxu0 %v74
    %104 = vmatprep.subr.mxu0 0.0
    %105 = vmatpush1.msra.mxu0 %v75
    %106 = vmatprep.subr.mxu0 0.0
    %107 = vmatpush1.msra.mxu0 %v76
    %108 = vmatprep.subr.mxu0 0.0
    %109 = vmatpush1.msra.mxu0 %v77
    %110 = vmatprep.subr.mxu0 0.0
    %111 = vmatpush1.msra.mxu0 %v78
    %112 = vmatprep.subr.mxu0 0.0
    %113 = vmatpush1.msra.mxu0 %v79
    %114 = vmatprep.subr.mxu0 0.0
    %115 = vmatpush1.msra.mxu0 %v80
    %116 = vmatprep.subr.mxu0 0.0
    %117 = vmatpush1.msra.mxu0 %v81
    %118 = vmatprep.subr.mxu0 0.0
    %119 = vmatpush1.msra.mxu0 0.0
    %120 = vmatprep.subr.mxu0 0.0
    %121 = vmatpush1.msra.mxu0 0.0
    %122 = vmatprep.subr.mxu0 0.0
    %123 = vmatpush1.msra.mxu0 0.0
    %124 = vmatprep.subr.mxu0 0.0
    %125 = vmatpush1.msra.mxu0 0.0
    %126 = vmatprep.subr.mxu0 0.0
    %127 = vmatpush1.msra.mxu0 0.0
    %128 = vmatprep.subr.mxu0 0.0
    %129 = vmatpush1.msra.mxu0 0.0
    %130 = vmatprep.subr.mxu0 0.0
    %131 = vmatpush1.msra.mxu0 0.0
    %132 = vmatprep.subr.mxu0 0.0
    %133 = vmatpush1.msra.mxu0 0.0
    %134 = vmatprep.subr.mxu0 0.0
    %135 = vmatpush1.msra.mxu0 0.0
    %136 = vmatprep.subr.mxu0 0.0
    %137 = vmatpush1.msra.mxu0 0.0
    %138 = vmatprep.subr.mxu0 0.0
    %139 = vmatpush1.msra.mxu0 0.0
    %140 = vmatprep.subr.mxu0 0.0
    %141 = vmatpush1.msra.mxu0 0.0
    %142 = vmatprep.subr.mxu0 0.0
    %143 = vmatpush1.msra.mxu0 0.0
    %144 = vmatprep.subr.mxu0 0.0
    %145 = vmatpush1.msra.mxu0 0.0
    %146 = vmatprep.subr.mxu0 0.0
    %147 = vmatpush1.msra.mxu0 0.0
    %148 = vmatprep.subr.mxu0 0.0
    %149 = vmatpush1.msra.mxu0 0.0
    %150 = vmatprep.mubr.f32.mxu0 0.0
    %151 = vmatmul.mubr.f32.gmra.mrb[0].mxu0 %v65
    %v152 = vpop.f32.mrb[0].mxu0
    %v153 = vadd.f32 %v85, %v152
    %v154 = vpop.f32.mrb[0].mxu0
    %155 = vdwg.mxu0
    %v156 = vmax.f32 %v153, 0.0
    %v157 = vld [vmem:[#allocation4] sm:$0xff]
    %v158 = vld [vmem:[#allocation4 + $0x8] sm:$0xff]
    %v159 = vld [vmem:[#allocation4 + $0x10] sm:$0xff]
    %v160 = vld [vmem:[#allocation4 + $0x18] sm:$0xff]
    %v161 = vld [vmem:[#allocation4 + $0x20] sm:$0xff]
    %v162 = vld [vmem:[#allocation4 + $0x28] sm:$0xff]
    %v163 = vld [vmem:[#allocation4 + $0x30] sm:$0xff]
    %v164 = vld [vmem:[#allocation4 + $0x38] sm:$0xff]
    %v165 = vld [vmem:[#allocation4 + $0x40] sm:$0xff]
    %v166 = vld [vmem:[#allocation4 + $0x48] sm:$0xff]
    %v167 = vld [vmem:[#allocation4 + $0x50] sm:$0xff]
    %v168 = vld [vmem:[#allocation4 + $0x58] sm:$0xff]
    %v169 = vld [vmem:[#allocation4 + $0x60] sm:$0xff]
    %v170 = vld [vmem:[#allocation4 + $0x68] sm:$0xff]
    %v171 = vld [vmem:[#allocation4 + $0x70] sm:$0xff]
    %v172 = vld [vmem:[#allocation4 + $0x78] sm:$0xff]
    %v173 = vlaneseq
    %v174 = vshrl.u32 %v173, 7
    %v175 = vsub.s32 1, %v174
    %v176 = vrot.slane %v64, %v175
    %177 = vmatprep.subr.mxu0 0.0
    %178 = vmatpush1.msra.mxu0 %v157
    %179 = vmatprep.subr.mxu0 0.0
    %180 = vmatpush1.msra.mxu0 %v158
    %181 = vmatprep.subr.mxu0 0.0
    %182 = vmatpush1.msra.mxu0 %v159
    %183 = vmatprep.subr.mxu0 0.0
    %184 = vmatpush1.msra.mxu0 %v160
    %185 = vmatprep.subr.mxu0 0.0
    %186 = vmatpush1.msra.mxu0 %v161
    %187 = vmatprep.subr.mxu0 0.0
    %188 = vmatpush1.msra.mxu0 %v162
    %189 = vmatprep.subr.mxu0 0.0
    %190 = vmatpush1.msra.mxu0 %v163
    %191 = vmatprep.subr.mxu0 0.0
    %192 = vmatpush1.msra.mxu0 %v164
    %193 = vmatprep.subr.mxu0 0.0
    %194 = vmatpush1.msra.mxu0 %v165
    %195 = vmatprep.subr.mxu0 0.0
    %196 = vmatpush1.msra.mxu0 %v166
    %197 = vmatprep.subr.mxu0 0.0
    %198 = vmatpush1.msra.mxu0 %v167
    %199 = vmatprep.subr.mxu0 0.0
    %200 = vmatpush1.msra.mxu0 %v168
    %201 = vmatprep.subr.mxu0 0.0
    %202 = vmatpush1.msra.mxu0 %v169
    %203 = vmatprep.subr.mxu0 0.0
    %204 = vmatpush1.msra.mxu0 %v170
    %205 = vmatprep.subr.mxu0 0.0
    %206 = vmatpush1.msra.mxu0 %v171
    %207 = vmatprep.subr.mxu0 0.0
    %208 = vmatpush1.msra.mxu0 %v172
    %209 = vmatprep.subr.mxu0 0.0
    %210 = vmatpush1.msra.mxu0 0.0
    %211 = vmatprep.subr.mxu0 0.0
    %212 = vmatpush1.msra.mxu0 0.0
    %213 = vmatprep.subr.mxu0 0.0
    %214 = vmatpush1.msra.mxu0 0.0
    %215 = vmatprep.subr.mxu0 0.0
    %216 = vmatpush1.msra.mxu0 0.0
    %217 = vmatprep.subr.mxu0 0.0
    %218 = vmatpush1.msra.mxu0 0.0
    %219 = vmatprep.subr.mxu0 0.0
    %220 = vmatpush1.msra.mxu0 0.0
    %221 = vmatprep.subr.mxu0 0.0
    %222 = vmatpush1.msra.mxu0 0.0
    %223 = vmatprep.subr.mxu0 0.0
    %224 = vmatpush1.msra.mxu0 0.0
    %225 = vmatprep.subr.mxu0 0.0
    %226 = vmatpush1.msra.mxu0 0.0
    %227 = vmatprep.subr.mxu0 0.0
    %228 = vmatpush1.msra.mxu0 0.0
    %229 = vmatprep.subr.mxu0 0.0
    %230 = vmatpush1.msra.mxu0 0.0
    %231 = vmatprep.subr.mxu0 0.0
    %232 = vmatpush1.msra.mxu0 0.0
    %233 = vmatprep.subr.mxu0 0.0
    %234 = vmatpush1.msra.mxu0 0.0
    %235 = vmatprep.subr.mxu0 0.0
    %236 = vmatpush1.msra.mxu0 0.0
    %237 = vmatprep.subr.mxu0 0.0
    %238 = vmatpush1.msra.mxu0 0.0
    %239 = vmatprep.subr.mxu0 0.0
    %240 = vmatpush1.msra.mxu0 0.0
    %241 = vmatprep.mubr.f32.mxu0 0.0
    %242 = vmatmul.mubr.f32.gmra.mrb[0].mxu0 %v156
    %v243 = vpop.f32.mrb[0].mxu0
    %v244 = vadd.f32 %v176, %v243
    %v245 = vpop.f32.mrb[0].mxu0
    %246 = vdwg.mxu0
    %v247 = vmul.f32 %v244, 0.5
    %v248 = vmul.f32 %v247, 1.442695
    %v249 = vpow.pop %v248
    %251 = vrot.lane.b32.xlu0 %v249, 14
    %v252 = vpop.permute.xlu0 %251
    %v254 = vmul.f32 %v65, %v252
    %256 = vrot.lane.b32.xlu0 %v254, 112
    %v257 = vpop.permute.xlu0 %256
    %v259 = vadd.f32 %v244, %v257
    %v260 = vld [vmem:[%s3] sm:$0x1]
    %262 = vset.pattern.permute.xlu0 0
    %263 = vperm.xlu0 %262, %v259
    %v264 = vpop.permute.xlu0 %263
    %v266 = vlaneseq
    %v267 = vshrl.u32 %v266, 7
    %v268 = vsub.s32 0, %v267
    %v269 = vrot.slane %v260, %v268
    %v270 = vmul.f32 %v264, %v269
    %v271 = vlaneseq
    %v272 = vshrl.u32 %v271, 7
    %v273 = vsub.s32 2, %v272
    %v274 = vrot.slane %v64, %v273
    %v275 = vadd.f32 %v274, %v270
    %v276 = vld [vmem:[%s3 + $0x1] sm:$0x1]
    %277 = vset.pattern.permute.xlu0 1
    %278 = vperm.xlu0 %277, %v259
    %v279 = vpop.permute.xlu0 %278
    %v281 = vlaneseq
    %v282 = vshrl.u32 %v281, 7
    %v283 = vsub.s32 0, %v282
    %v284 = vrot.slane %v276, %v283
    %v285 = vmul.f32 %v279, %v284
    %v286 = vadd.f32 %v275, %v285
    %v287 = vmax.f32 %v286, 0.0
    %v288 = vld [vmem:[#allocation6] sm:$0xff]
    %v289 = vld [vmem:[#allocation6 + $0x8] sm:$0xff]
    %v290 = vld [vmem:[#allocation6 + $0x10] sm:$0xff]
    %v291 = vld [vmem:[#allocation6 + $0x18] sm:$0xff]
    %v292 = vld [vmem:[#allocation6 + $0x20] sm:$0xff]
    %v293 = vld [vmem:[#allocation6 + $0x28] sm:$0xff]
    %v294 = vld [vmem:[#allocation6 + $0x30] sm:$0xff]
    %v295 = vld [vmem:[#allocation6 + $0x38] sm:$0xff]
    %v296 = vld [vmem:[#allocation6 + $0x40] sm:$0xff]
    %v297 = vld [vmem:[#allocation6 + $0x48] sm:$0xff]
    %v298 = vld [vmem:[#allocation6 + $0x50] sm:$0xff]
    %v299 = vld [vmem:[#allocation6 + $0x58] sm:$0xff]
    %v300 = vld [vmem:[#allocation6 + $0x60] sm:$0xff]
    %v301 = vld [vmem:[#allocation6 + $0x68] sm:$0xff]
    %v302 = vld [vmem:[#allocation6 + $0x70] sm:$0xff]
    %v303 = vld [vmem:[#allocation6 + $0x78] sm:$0xff]
    %v304 = vlaneseq
    %v305 = vshrl.u32 %v304, 7
    %v306 = vsub.s32 3, %v305
    %v307 = vrot.slane %v64, %v306
    %308 = vmatprep.subr.mxu0 0.0
    %309 = vmatpush1.msra.mxu0 %v288
    %310 = vmatprep.subr.mxu0 0.0
    %311 = vmatpush1.msra.mxu0 %v289
    %312 = vmatprep.subr.mxu0 0.0
    %313 = vmatpush1.msra.mxu0 %v290
    %314 = vmatprep.subr.mxu0 0.0
    %315 = vmatpush1.msra.mxu0 %v291
    %316 = vmatprep.subr.mxu0 0.0
    %317 = vmatpush1.msra.mxu0 %v292
    %318 = vmatprep.subr.mxu0 0.0
    %319 = vmatpush1.msra.mxu0 %v293
    %320 = vmatprep.subr.mxu0 0.0
    %321 = vmatpush1.msra.mxu0 %v294
    %322 = vmatprep.subr.mxu0 0.0
    %323 = vmatpush1.msra.mxu0 %v295
    %324 = vmatprep.subr.mxu0 0.0
    %325 = vmatpush1.msra.mxu0 %v296
    %326 = vmatprep.subr.mxu0 0.0
    %327 = vmatpush1.msra.mxu0 %v297
    %328 = vmatprep.subr.mxu0 0.0
    %329 = vmatpush1.msra.mxu0 %v298
    %330 = vmatprep.subr.mxu0 0.0
    %331 = vmatpush1.msra.mxu0 %v299
    %332 = vmatprep.subr.mxu0 0.0
    %333 = vmatpush1.msra.mxu0 %v300
    %334 = vmatprep.subr.mxu0 0.0
    %335 = vmatpush1.msra.mxu0 %v301
    %336 = vmatprep.subr.mxu0 0.0
    %337 = vmatpush1.msra.mxu0 %v302
    %338 = vmatprep.subr.mxu0 0.0
    %339 = vmatpush1.msra.mxu0 %v303
    %340 = vmatprep.subr.mxu0 0.0
    %341 = vmatpush1.msra.mxu0 0.0
    %342 = vmatprep.subr.mxu0 0.0
    %343 = vmatpush1.msra.mxu0 0.0
    %344 = vmatprep.subr.mxu0 0.0
    %345 = vmatpush1.msra.mxu0 0.0
    %346 = vmatprep.subr.mxu0 0.0
    %347 = vmatpush1.msra.mxu0 0.0
    %348 = vmatprep.subr.mxu0 0.0
    %349 = vmatpush1.msra.mxu0 0.0
    %350 = vmatprep.subr.mxu0 0.0
    %351 = vmatpush1.msra.mxu0 0.0
    %352 = vmatprep.subr.mxu0 0.0
    %353 = vmatpush1.msra.mxu0 0.0
    %354 = vmatprep.subr.mxu0 0.0
    %355 = vmatpush1.msra.mxu0 0.0
    %356 = vmatprep.subr.mxu0 0.0
    %357 = vmatpush1.msra.mxu0 0.0
    %358 = vmatprep.subr.mxu0 0.0
    %359 = vmatpush1.msra.mxu0 0.0
    %360 = vmatprep.subr.mxu0 0.0
    %361 = vmatpush1.msra.mxu0 0.0
    %362 = vmatprep.subr.mxu0 0.0
    %363 = vmatpush1.msra.mxu0 0.0
    %364 = vmatprep.subr.mxu0 0.0
    %365 = vmatpush1.msra.mxu0 0.0
    %366 = vmatprep.subr.mxu0 0.0
    %367 = vmatpush1.msra.mxu0 0.0
    %368 = vmatprep.subr.mxu0 0.0
    %369 = vmatpush1.msra.mxu0 0.0
    %370 = vmatprep.subr.mxu0 0.0
    %371 = vmatpush1.msra.mxu0 0.0
    %372 = vmatprep.mubr.f32.mxu0 0.0
    %373 = vmatmul.mubr.f32.gmra.mrb[0].mxu0 %v287
    %v374 = vpop.f32.mrb[0].mxu0
    %v375 = vadd.f32 %v307, %v374
    %v376 = vpop.f32.mrb[0].mxu0
    %377 = vdwg.mxu0
    %v378 = vxor.u32 %v375, 2147483648
    %v379 = vmul.f32 %v378, 1.442695
    %v380 = vpow.pop %v379
    %v381 = vadd.f32 %v380, 1.0
    %v382 = vrcp.pop %v381
    %v383 = vmul.f32 1.0, %v382
    %v384 = vlaneseq
    %v385 = vand.u32 %v384, 127
    %386 = vrot.lane.b32.xlu0 %v244, 16
    %v387 = vpop.permute.xlu0 %386
    %vm388 = vcmp.lt.s32.totalorder %v385, 16
    %v389 = vsel %vm388, %v383, %v387
    %390 = vst [vmem:[%s6] sm:$0xff] %v389
    // Predicated region
    $region38: #{vae_forward.1} parent=1 // pred_check
      _
    $region39: #{vae_forward.1} parent=1 // pred_check_branch
      %392 = sbr.rel (0) target = $region41
    $region40: #{vae_forward.1} parent=1 // pred_region
      _
    $region41: #{vae_forward.1} parent=1 // pred_fallthru
      _
    // Predicated region
    $region42: #{vae_forward.1} parent=1 // pred_check
      _
    $region43: #{vae_forward.1} parent=1 // pred_check_branch
      %394 = sbr.rel (0) target = $region45
    $region44: #{vae_forward.1} parent=1 // pred_region
      _
    $region45: #{vae_forward.1} parent=1 // pred_fallthru
      _
    %395 = vsyncpa [#allocation3], 1
    %396 = vsyncpa [#allocation5], 1

</llo_original>
